<compile_context>
chip_gen: v5e
topology: v5e:2x2
jax: 0.10.0
libtpu: 0.0.40
codegen_flags: <defaults>
</compile_context>

<pallas_src>
import jax
import jax.numpy as jnp
from jax.experimental import pallas as pl
from jax.experimental.pallas import tpu as pltpu


def _copy_kernel(x_ref, o_ref):
    # Pure copy of the current VMEM tile.
    o_ref[...] = x_ref[...]


def _pallas_copy_2d(x2d: jax.Array, tile_r: int, *, vmem_limit_bytes=None) -> jax.Array:
    rows, cols = x2d.shape
    nbytes = x2d.size * x2d.dtype.itemsize
    grid = (pl.cdiv(rows, tile_r),)

    cp_kwargs = dict(dimension_semantics=("parallel",))
    if vmem_limit_bytes is not None:
        cp_kwargs["vmem_limit_bytes"] = vmem_limit_bytes

    return pl.pallas_call(
        _copy_kernel,
        out_shape=jax.ShapeDtypeStruct((rows, cols), x2d.dtype),
        grid_spec=pltpu.PrefetchScalarGridSpec(
            num_scalar_prefetch=0,
            grid=grid,
            in_specs=[pl.BlockSpec((tile_r, cols), lambda i: (i, 0))],
            out_specs=pl.BlockSpec((tile_r, cols), lambda i: (i, 0)),
        ),
        compiler_params=pltpu.CompilerParams(**cp_kwargs),
        cost_estimate=pl.CostEstimate(
            flops=0, transcendentals=0, bytes_accessed=2 * nbytes
        ),
    )(x2d)


def identity(x: jax.Array) -> jax.Array:
    """Identity forward pass: the true no-op (zero work, zero HBM traffic)."""
    return x


def identity_pallas(x: jax.Array) -> jax.Array:
    """Identity implemented as a tiled, lane-dense Pallas HBM copy.

    Only useful when an explicit kernel boundary is required; otherwise use
    `identity` (the no-op) above.
    """
    if x.ndim == 0 or x.size == 0:
        return x

    orig_shape = x.shape
    dtype = x.dtype
    itemsize = jnp.dtype(dtype).itemsize
    n = x.size

    # Sublane packing: 8 rows for 32-bit, 16 for bf16/fp16, 32 for int8/fp8.
    pack = max(8, 8 * (4 // max(1, itemsize)))

    # Generation-specific block sizing.
    kind = ""
    try:
        kind = jax.devices()[0].device_kind.lower()
    except Exception:
        pass
    is_v7 = "v7" in kind
    # v5e/v6e: ~2 MiB blocks (in+out double-buffered = 8 MiB, under the 16 MiB
    # v5e scoped-VMEM default).  v7x: larger 8 MiB blocks to hide the ~0.35 us
    # per-step overhead at 3.2 TB/s, with an explicit scoped-VMEM budget.
    target_block_bytes = (8 << 20) if is_v7 else (2 << 20)
    vmem_limit = (48 << 20) if is_v7 else None

    flat = x.reshape(-1)

    # Pick the widest lane-dense last dimension that divides the element count.
    lanes = None
    for cand in (2048, 1024, 512, 256, 128):
        if n % cand == 0:
            lanes = cand
            break

    if lanes is not None:
        bulk, tail = n, 0
    else:
        # Not a multiple of 128: copy the 128-aligned bulk through the kernel
        # and stitch the short tail back with plain XLA (avoids the old
        # (1, n) layout whose sublane padding inflated VMEM 8-32x).
        lanes = 128
        bulk = (n // lanes) * lanes
        tail = n - bulk

    if bulk == 0:
        # Fewer than 128 elements: nothing worth launching a kernel for.
        return x

    rows = bulk // lanes
    rows_target = max(pack, (target_block_bytes // (lanes * itemsize)) // pack * pack)
    tile_r = rows if rows <= rows_target else rows_target

    # On v7x (2 TensorCores/chip) keep the grid at >= 2 steps so the
    # "parallel" axis can actually be sharded across both cores.
    if is_v7 and rows > pack and tile_r >= rows:
        tile_r = max(pack, ((rows + 1) // 2 + pack - 1) // pack * pack)

    bulk2d = flat[:bulk].reshape(rows, lanes)
    bulk_out = _pallas_copy_2d(bulk2d, tile_r, vmem_limit_bytes=vmem_limit).reshape(-1)

    if tail:
        out_flat = jnp.concatenate([bulk_out, flat[bulk:]])
    else:
        out_flat = bulk_out

    return out_flat.reshape(orig_shape)


if __name__ == "__main__":
    key = jax.random.PRNGKey(0)
    # Small NCHW input consistent with a visual wrapper: batch=2, channels=4, 16x16.
    x = jax.random.normal(key, (2, 4, 16, 16), dtype=jnp.float32)

    # True Identity forward (the module's semantics, zero cost).
    assert identity(x) is x

    # Pallas copy path (lane-dense, element count is a multiple of 128).
    y = identity_pallas(x)
    jax.block_until_ready(y)
    assert y.shape == x.shape
    assert y.dtype == x.dtype
    assert bool(jnp.all(y == x))

    # Bulk-plus-tail path: element count (3*5*11 = 165) is not a multiple of 128.
    x2 = jax.random.normal(jax.random.PRNGKey(0), (3, 5, 11), dtype=jnp.float32)
    y2 = identity_pallas(x2)
    jax.block_until_ready(y2)
    assert y2.shape == x2.shape
    assert y2.dtype == x2.dtype
    assert bool(jnp.all(y2 == x2))

    # Tiny-tensor path (< 128 elements): returns the input untouched.
    x3 = jax.random.normal(jax.random.PRNGKey(0), (3, 5, 7), dtype=jnp.float32)
    y3 = identity_pallas(x3)
    jax.block_until_ready(y3)
    assert bool(jnp.all(y3 == x3))

    print("KERNEL_OK")
</pallas_src>

<mosaic_0001>
module attributes {stable_mosaic.version = 11 : i64} {
  func.func @_copy_kernel(%arg0: i32, %arg1: memref<1x2048xf32, #tpu.memory_space<vmem>>, %arg2: memref<1x2048xf32, #tpu.memory_space<vmem>>) attributes {dimension_semantics = [#tpu.dimension_semantics<parallel>], iteration_bounds = array<i64: 1>, scalar_prefetch = 0 : i64, scratch_operands = 0 : i64, tpu.core_type = #tpu.core_type<tc>, window_params = [{transform_indices = @transform_0, window_bounds = array<i64: 1, 2048>}, {transform_indices = @transform_1, window_bounds = array<i64: 1, 2048>}]} {
    %c0 = arith.constant 0 : index
    %c0_0 = arith.constant 0 : index
    %0 = vector.load %arg1[%c0, %c0_0] : memref<1x2048xf32, #tpu.memory_space<vmem>>, vector<1x2048xf32>
    %c0_1 = arith.constant 0 : index
    %c0_2 = arith.constant 0 : index
    %1 = vector.load %arg2[%c0_1, %c0_2] : memref<1x2048xf32, #tpu.memory_space<vmem>>, vector<1x2048xf32>
    tpu.vector_store %arg2[%c0_1, %c0_2], %0 {strides = array<i32>} : memref<1x2048xf32, #tpu.memory_space<vmem>>, vector<1x2048xf32>,
    return
  }
  func.func @transform_0(%arg0: i32) -> (i32, i32) {
    %c0_i32 = arith.constant 0 : i32
    %c0_i32_0 = arith.constant 0 : i32
    return %arg0, %c0_i32 : i32, i32
  }
  func.func @transform_1(%arg0: i32) -> (i32, i32) {
    %c0_i32 = arith.constant 0 : i32
    %c0_i32_0 = arith.constant 0 : i32
    return %arg0, %c0_i32 : i32, i32
  }
}

</mosaic_0001>

<llo_original>
// kernel: tpu_custom_call.1
$region0: #{tpu_custom_call.1}
  #allocation0 [shape = 'u32[]', space=smem, size = 0x4, offset = 0x4, fixed_abs, tag = 'smem constant byte address 0x4 - core index']
  #allocation1 [shape = 'u32[72,128]{1,0:T(1,128)}', space=vmem, size = 0x9000, scoped, tag = 'internal scratch']
  %s0 = inlined_call_operand.hbm [shape: f32[1,2048], index: 0, kind: input, shape index: {}]
  %s1 = inlined_call_operand.hbm [shape: f32[1,2048], index: 1, kind: output, shape index: {}]
  %s2 = sld [smem:[#allocation0]]
  $region18: #{tpu_custom_call.1} parent=0
    _
  %s4 = ssub.s32 1, %s2
  %s5 = scalar_select 0, %s4, %s2
  $region1: #{tpu_custom_call.1} parent=0
    #allocation2 [shape = 'u8[8192]{0}', space=vmem, size = 0x2000, scoped, tag = 'input window, operand 0, single buffered']
    #allocation3 [shape = 's32[1]{0}', space=sflag, size = 0x4, scoped, tag = 'scoped memory for tpu_custom_call.1']
    #allocation4 [shape = 's32[1]{0}', space=sflag, size = 0x4, scoped, tag = 'scoped memory for tpu_custom_call.1']
    #allocation5 [shape = 'u8[8192]{0}', space=vmem, size = 0x2000, scoped, tag = 'output window, operand 0, single buffered']
    %6 = vsyncpa [#allocation3], 0
    %7 = vsyncpa [#allocation4], 0
    // Predicated region
    $region2: #{tpu_custom_call.1} parent=1 // pred_check
      _
    $region3: #{tpu_custom_call.1} parent=1 // pred_check_branch
      %9 = sbr.rel (0) target = $region5
    $region4: #{tpu_custom_call.1} parent=1 // pred_region
      %11 = vsyncadd [#allocation3], 0
      %s13 = sshll.u32 %s0, 4
      %s14 = int_to_ptr.hbm [resolvable:$true] %s13
      %s15 = sshll.u32 [#allocation2], 4
      %s16 = int_to_ptr.vmem [resolvable:$true] %s15
      %18 = dma.hbm_to_vmem [thread:$0]  %s14, 256, %s16, [#allocation3]
    $region5: #{tpu_custom_call.1} parent=1 // pred_fallthru
      _
    // Predicated region
    $region6: #{tpu_custom_call.1} parent=1 // pred_check
      _
    $region7: #{tpu_custom_call.1} parent=1 // pred_check_branch
      %20 = sbr.rel (0) target = $region9
    $region8: #{tpu_custom_call.1} parent=1 // pred_region
      %22 = dma.done [#allocation3], 256
    $region9: #{tpu_custom_call.1} parent=1 // pred_fallthru
      _
    %v23 = vld [vmem:[#allocation2] sm:$0xff]
    %v24 = vld [vmem:[#allocation2 + $0x8] sm:$0xff]
    %25 = vst [vmem:[#allocation5] sm:$0xff] %v23
    %26 = vst [vmem:[#allocation5 + $0x8] sm:$0xff] %v24
    // Predicated region
    $region10: #{tpu_custom_call.1} parent=1 // pred_check
      _
    $region11: #{tpu_custom_call.1} parent=1 // pred_check_branch
      %28 = sbr.rel (0) target = $region13
    $region12: #{tpu_custom_call.1} parent=1 // pred_region
      %30 = vsyncadd [#allocation4], 0
      %s32 = sshll.u32 [#allocation5], 4
      %s33 = int_to_ptr.vmem [resolvable:$true] %s32
      %s34 = sshll.u32 %s1, 4
      %s35 = int_to_ptr.hbm [resolvable:$true] %s34
      %37 = dma.vmem_to_hbm [thread:$0]  %s33, 256, %s35, [#allocation4]
    $region13: #{tpu_custom_call.1} parent=1 // pred_fallthru
      _
    // Predicated region
    $region14: #{tpu_custom_call.1} parent=1 // pred_check
      _
    $region15: #{tpu_custom_call.1} parent=1 // pred_check_branch
      %39 = sbr.rel (0) target = $region17
    $region16: #{tpu_custom_call.1} parent=1 // pred_region
      %41 = dma.done [#allocation4], 256
    $region17: #{tpu_custom_call.1} parent=1 // pred_fallthru
      _
    %42 = vsyncpa [#allocation3], 1
    %43 = vsyncpa [#allocation4], 1

</llo_original>
